<compile_context>
chip_gen: v6e
topology: v6e:2x2x1
jax: 0.10.0
libtpu: 0.0.40
codegen_flags: <defaults>
</compile_context>

<pallas_src>
import functools
import math

import jax
import jax.numpy as jnp
from jax.experimental import pallas as pl
from jax.experimental.pallas import tpu as pltpu


# ----------------------------------------------------------------------------
# Fused multi-layer kernel:
#   refs = (x_ref, w0_ref, b0_ref, w1_ref, b1_ref, ..., o_ref)
#   x_ref: (tm, K0)   w_i: (K_i, N_i)   b_i: (1, N_i)   o_ref: (tm, N_last)
# All layers are computed back-to-back on the current batch tile; the
# intermediate activations live entirely on-chip.
# ----------------------------------------------------------------------------
def _make_fused_mlp_kernel(num_layers):
    def kernel(*refs):
        x_ref = refs[0]
        o_ref = refs[1 + 2 * num_layers]
        h = x_ref[...].astype(jnp.float32)
        for i in range(num_layers):
            w_ref = refs[1 + 2 * i]
            b_ref = refs[2 + 2 * i]
            y = jnp.dot(h, w_ref[...], preferred_element_type=jnp.float32)
            y = y + b_ref[...]          # broadcast (1, N_i) over rows
            h = jnp.tanh(y)             # act_fun (custom activation; tanh)
        o_ref[...] = h.astype(o_ref.dtype)
    return kernel


def _choose_tm(M):
    """Rows per batch tile: multiple of 8, capped at 256."""
    m8 = ((M + 7) // 8) * 8
    return min(m8, 256)


def fused_mlp_forward(x, params):
    """out = tanh(...tanh(tanh(x @ W0 + b0) @ W1 + b1)... ) in ONE kernel.

    x:      (M, K0) float32
    params: list of (W_i, b_i) with W_i: (K_i, N_i)  [already (in, out)],
            b_i: (1, N_i)
    """
    M, K0 = x.shape
    num_layers = len(params)
    assert num_layers >= 1
    assert params[0][0].shape[0] == K0
    n_out = params[-1][0].shape[1]

    tm = _choose_tm(M)
    m_tiles = pl.cdiv(M, tm)
    Mp = m_tiles * tm
    if Mp != M:
        x = jnp.pad(x, ((0, Mp - M), (0, 0)))   # padded rows are sliced off below

    in_specs = [pl.BlockSpec((tm, K0), lambda i: (i, 0))]
    flat_args = [x]
    for (w, b) in params:
        Kw, Nw = w.shape
        # Grid-invariant blocks (index_map constant) -> weight stays resident.
        in_specs.append(pl.BlockSpec((Kw, Nw), lambda i: (0, 0)))
        in_specs.append(pl.BlockSpec((1, Nw), lambda i: (0, 0)))
        flat_args.append(w)
        flat_args.append(b)

    out = pl.pallas_call(
        _make_fused_mlp_kernel(num_layers),
        out_shape=jax.ShapeDtypeStruct((Mp, n_out), x.dtype),
        grid_spec=pltpu.PrefetchScalarGridSpec(
            num_scalar_prefetch=0,
            grid=(m_tiles,),
            in_specs=in_specs,
            out_specs=pl.BlockSpec((tm, n_out), lambda i: (i, 0)),
        ),
        compiler_params=pltpu.CompilerParams(
            dimension_semantics=("parallel",)),
    )(*flat_args)

    if Mp != M:
        out = out[:M]
    return out


# ----------------------------------------------------------------------------
# Parameter init mirroring PyTorch nn.Linear defaults, but stored in the
# kernel-friendly layout: W as (in, out) = (K, N), bias as (1, N).
# ----------------------------------------------------------------------------
def init_mlp_params(key, net_dims):
    params = []
    for i in range(len(net_dims) - 1):
        fan_in, fan_out = net_dims[i], net_dims[i + 1]
        key, kw, kb = jax.random.split(key, 3)
        bound = 1.0 / math.sqrt(fan_in)
        # Pre-transposed once at init: (K, N) instead of PyTorch's (N, K).
        w = jax.random.uniform(kw, (fan_in, fan_out), jnp.float32, -bound, bound)
        b = jax.random.uniform(kb, (1, fan_out), jnp.float32, -bound, bound)
        params.append((w, b))
    return params


@jax.jit
def nn_mlp_custom_act_forward(x, params):
    return fused_mlp_forward(x, params)


def reference_forward(x, params):
    out = x
    for (w, b) in params:
        out = jnp.tanh(out @ w + b)
    return out


if __name__ == "__main__":
    key = jax.random.PRNGKey(0)

    batch = 8
    net_dims = [16, 32, 8]          # net_dims as in the module __init__

    kx, kp = jax.random.split(key)
    x = jax.random.normal(kx, (batch, net_dims[0]), jnp.float32)
    params = init_mlp_params(kp, net_dims)

    out = nn_mlp_custom_act_forward(x, params)
    out = jax.block_until_ready(out)

    ref = reference_forward(x, params)
    assert out.shape == (batch, net_dims[-1])
    assert jnp.allclose(out, ref, atol=1e-5, rtol=1e-5), "mismatch vs reference"

    # Also exercise a non-tile-aligned batch to check the cdiv/padding path.
    x2 = jax.random.normal(jax.random.PRNGKey(1), (13, net_dims[0]), jnp.float32)
    out2 = jax.block_until_ready(nn_mlp_custom_act_forward(x2, params))
    ref2 = reference_forward(x2, params)
    assert out2.shape == (13, net_dims[-1])
    assert jnp.allclose(out2, ref2, atol=1e-5, rtol=1e-5), "mismatch (padded path)"

    print("KERNEL_OK")
</pallas_src>

<mosaic_0001>
module attributes {stable_mosaic.version = 11 : i64} {
  func.func @kernel(%arg0: i32, %arg1: memref<8x16xf32, #tpu.memory_space<vmem>>, %arg2: memref<16x32xf32, #tpu.memory_space<vmem>>, %arg3: memref<1x32xf32, #tpu.memory_space<vmem>>, %arg4: memref<32x8xf32, #tpu.memory_space<vmem>>, %arg5: memref<1x8xf32, #tpu.memory_space<vmem>>, %arg6: memref<8x8xf32, #tpu.memory_space<vmem>>) attributes {dimension_semantics = [#tpu.dimension_semantics<parallel>], iteration_bounds = array<i64: 1>, scalar_prefetch = 0 : i64, scratch_operands = 0 : i64, tpu.core_type = #tpu.core_type<tc>, window_params = [{transform_indices = @transform_0, window_bounds = array<i64: 8, 16>}, {pipeline_mode = #tpu.pipeline_mode<synchronous>, transform_indices = @transform_1, window_bounds = array<i64: 16, 32>}, {pipeline_mode = #tpu.pipeline_mode<synchronous>, transform_indices = @transform_2, window_bounds = array<i64: 1, 32>}, {pipeline_mode = #tpu.pipeline_mode<synchronous>, transform_indices = @transform_3, window_bounds = array<i64: 32, 8>}, {pipeline_mode = #tpu.pipeline_mode<synchronous>, transform_indices = @transform_4, window_bounds = array<i64: 1, 8>}, {transform_indices = @transform_5, window_bounds = array<i64: 8, 8>}]} {
    %c0 = arith.constant 0 : index
    %c0_0 = arith.constant 0 : index
    %0 = vector.load %arg1[%c0, %c0_0] : memref<8x16xf32, #tpu.memory_space<vmem>>, vector<8x16xf32>
    %c0_1 = arith.constant 0 : index
    %c0_2 = arith.constant 0 : index
    %1 = vector.load %arg2[%c0_1, %c0_2] : memref<16x32xf32, #tpu.memory_space<vmem>>, vector<16x32xf32>
    %cst = arith.constant dense<0.000000e+00> : vector<8x32xf32>
    %2 = tpu.matmul %0, %1, %cst {dimension_numbers = #tpu.dot_dimension_numbers<[1], [0], [0], [1], [0, 0, 1, 1], [], []>} : vector<8x16xf32>, vector<16x32xf32>, vector<8x32xf32> -> vector<8x32xf32>
    %c0_3 = arith.constant 0 : index
    %c0_4 = arith.constant 0 : index
    %3 = vector.load %arg3[%c0_3, %c0_4] : memref<1x32xf32, #tpu.memory_space<vmem>>, vector<1x32xf32>
    %4 = vector.broadcast %3 : vector<1x32xf32> to vector<8x32xf32>
    %5 = arith.addf %2, %4 : vector<8x32xf32>
    %6 = math.tanh %5 : vector<8x32xf32>
    %c0_5 = arith.constant 0 : index
    %c0_6 = arith.constant 0 : index
    %7 = vector.load %arg4[%c0_5, %c0_6] : memref<32x8xf32, #tpu.memory_space<vmem>>, vector<32x8xf32>
    %cst_7 = arith.constant dense<0.000000e+00> : vector<8x8xf32>
    %8 = tpu.matmul %6, %7, %cst_7 {dimension_numbers = #tpu.dot_dimension_numbers<[1], [0], [0], [1], [0, 0, 1, 1], [], []>} : vector<8x32xf32>, vector<32x8xf32>, vector<8x8xf32> -> vector<8x8xf32>
    %c0_8 = arith.constant 0 : index
    %c0_9 = arith.constant 0 : index
    %9 = vector.load %arg5[%c0_8, %c0_9] : memref<1x8xf32, #tpu.memory_space<vmem>>, vector<1x8xf32>
    %10 = vector.broadcast %9 : vector<1x8xf32> to vector<8x8xf32>
    %11 = arith.addf %8, %10 : vector<8x8xf32>
    %12 = math.tanh %11 : vector<8x8xf32>
    %c0_10 = arith.constant 0 : index
    %c0_11 = arith.constant 0 : index
    %13 = vector.load %arg6[%c0_10, %c0_11] : memref<8x8xf32, #tpu.memory_space<vmem>>, vector<8x8xf32>
    tpu.vector_store %arg6[%c0_10, %c0_11], %12 {strides = array<i32>} : memref<8x8xf32, #tpu.memory_space<vmem>>, vector<8x8xf32>,
    return
  }
  func.func @transform_0(%arg0: i32) -> (i32, i32) {
    %c0_i32 = arith.constant 0 : i32
    %c0_i32_0 = arith.constant 0 : i32
    return %arg0, %c0_i32 : i32, i32
  }
  func.func @transform_1(%arg0: i32) -> (i32, i32) {
    %c0_i32 = arith.constant 0 : i32
    %c0_i32_0 = arith.constant 0 : i32
    %c0_i32_1 = arith.constant 0 : i32
    return %c0_i32, %c0_i32_0 : i32, i32
  }
  func.func @transform_2(%arg0: i32) -> (i32, i32) {
    %c0_i32 = arith.constant 0 : i32
    %c0_i32_0 = arith.constant 0 : i32
    %c0_i32_1 = arith.constant 0 : i32
    return %c0_i32, %c0_i32_0 : i32, i32
  }
  func.func @transform_3(%arg0: i32) -> (i32, i32) {
    %c0_i32 = arith.constant 0 : i32
    %c0_i32_0 = arith.constant 0 : i32
    %c0_i32_1 = arith.constant 0 : i32
    return %c0_i32, %c0_i32_0 : i32, i32
  }
  func.func @transform_4(%arg0: i32) -> (i32, i32) {
    %c0_i32 = arith.constant 0 : i32
    %c0_i32_0 = arith.constant 0 : i32
    %c0_i32_1 = arith.constant 0 : i32
    return %c0_i32, %c0_i32_0 : i32, i32
  }
  func.func @transform_5(%arg0: i32) -> (i32, i32) {
    %c0_i32 = arith.constant 0 : i32
    %c0_i32_0 = arith.constant 0 : i32
    return %arg0, %c0_i32 : i32, i32
  }
}

</mosaic_0001>

<llo_original>
// kernel: nn_mlp_custom_act_forward.1
$region0: #{nn_mlp_custom_act_forward.1}
  #allocation0 [shape = 'u32[]', space=smem, size = 0x4, offset = 0x4, fixed_abs, tag = 'smem constant byte address 0x4 - core index']
  #allocation1 [shape = 'u32[144,128]{1,0:T(1,128)}', space=vmem, size = 0x12000, scoped, tag = 'internal scratch']
  %s0 = inlined_call_operand.vmem [shape: f32[8,16], index: 0, kind: input, shape index: {}]
  %s1 = inlined_call_operand.vmem [shape: f32[16,32], index: 1, kind: input, shape index: {}]
  %s2 = inlined_call_operand.vmem [shape: f32[1,32], index: 2, kind: input, shape index: {}]
  %s3 = inlined_call_operand.vmem [shape: f32[32,8], index: 3, kind: input, shape index: {}]
  %s4 = inlined_call_operand.vmem [shape: f32[1,8], index: 4, kind: input, shape index: {}]
  %s5 = inlined_call_operand.hbm [shape: f32[8,8], index: 5, kind: output, shape index: {}]
  %s6 = sld [smem:[#allocation0]]
  $region30: #{nn_mlp_custom_act_forward.1} parent=0
    _
  %s8 = ssub.s32 1, %s6
  %s9 = scalar_select 0, %s8, %s6
  $region1: #{nn_mlp_custom_act_forward.1} parent=0
    #allocation2 [shape = 'u8[4096]{0}', space=vmem, size = 0x1000, scoped, tag = 'output window, operand 0, single buffered']
    #allocation3 [shape = 's32[1]{0}', space=sflag, size = 0x4, scoped, tag = 'scoped memory for nn_mlp_custom_act_forward.1']
    %10 = vsyncpa [#allocation3], 0
    // Predicated region
    $region2: #{nn_mlp_custom_act_forward.1} parent=1 // pred_check
      _
    $region3: #{nn_mlp_custom_act_forward.1} parent=1 // pred_check_branch
      %12 = sbr.rel (0) target = $region5
    $region4: #{nn_mlp_custom_act_forward.1} parent=1 // pred_region
      _
    $region5: #{nn_mlp_custom_act_forward.1} parent=1 // pred_fallthru
      _
    // Predicated region
    $region6: #{nn_mlp_custom_act_forward.1} parent=1 // pred_check
      _
    $region7: #{nn_mlp_custom_act_forward.1} parent=1 // pred_check_branch
      %14 = sbr.rel (0) target = $region9
    $region8: #{nn_mlp_custom_act_forward.1} parent=1 // pred_region
      _
    $region9: #{nn_mlp_custom_act_forward.1} parent=1 // pred_fallthru
      _
    // Predicated region
    $region10: #{nn_mlp_custom_act_forward.1} parent=1 // pred_check
      _
    $region11: #{nn_mlp_custom_act_forward.1} parent=1 // pred_check_branch
      %16 = sbr.rel (0) target = $region13
    $region12: #{nn_mlp_custom_act_forward.1} parent=1 // pred_region
      _
    $region13: #{nn_mlp_custom_act_forward.1} parent=1 // pred_fallthru
      _
    // Predicated region
    $region14: #{nn_mlp_custom_act_forward.1} parent=1 // pred_check
      _
    $region15: #{nn_mlp_custom_act_forward.1} parent=1 // pred_check_branch
      %18 = sbr.rel (0) target = $region17
    $region16: #{nn_mlp_custom_act_forward.1} parent=1 // pred_region
      _
    $region17: #{nn_mlp_custom_act_forward.1} parent=1 // pred_fallthru
      _
    // Predicated region
    $region18: #{nn_mlp_custom_act_forward.1} parent=1 // pred_check
      _
    $region19: #{nn_mlp_custom_act_forward.1} parent=1 // pred_check_branch
      %20 = sbr.rel (0) target = $region21
    $region20: #{nn_mlp_custom_act_forward.1} parent=1 // pred_region
      _
    $region21: #{nn_mlp_custom_act_forward.1} parent=1 // pred_fallthru
      _
    %v21 = vld [vmem:[%s0] sm:$0xff]
    %v22 = vld [vmem:[%s1] sm:$0xff]
    %v23 = vld [vmem:[%s1 + $0x8] sm:$0xff]
    %v24 = vld [vmem:[%s2] sm:$0x1]
    %v26 = vlaneseq
    %v27 = vshrl.u32 %v26, 7
    %v28 = vsub.s32 0, %v27
    %v29 = vrot.slane %v24, %v28
    %vm31 = vcmask 130048
    %v33 = vsel %vm31, %v21, 0
    %35 = vmatprep.subr.mxu0 0.0
    %36 = vmatpush1.msra.mxu0 0.0
    %37 = vmatprep.subr.mxu0 0.0
    %38 = vmatpush1.msra.mxu0 0.0
    %39 = vmatprep.subr.mxu0 0.0
    %40 = vmatpush1.msra.mxu0 0.0
    %41 = vmatprep.subr.mxu0 0.0
    %42 = vmatpush1.msra.mxu0 0.0
    %43 = vmatprep.subr.mxu0 0.0
    %44 = vmatpush1.msra.mxu0 0.0
    %45 = vmatprep.subr.mxu0 0.0
    %46 = vmatpush1.msra.mxu0 0.0
    %47 = vmatprep.subr.mxu0 0.0
    %48 = vmatpush1.msra.mxu0 0.0
    %49 = vmatprep.subr.mxu0 0.0
    %50 = vmatpush1.msra.mxu0 0.0
    %51 = vmatprep.subr.mxu0 0.0
    %52 = vmatpush1.msra.mxu0 0.0
    %53 = vmatprep.subr.mxu0 0.0
    %54 = vmatpush1.msra.mxu0 0.0
    %55 = vmatprep.subr.mxu0 0.0
    %56 = vmatpush1.msra.mxu0 0.0
    %57 = vmatprep.subr.mxu0 0.0
    %58 = vmatpush1.msra.mxu0 0.0
    %59 = vmatprep.subr.mxu0 0.0
    %60 = vmatpush1.msra.mxu0 0.0
    %61 = vmatprep.subr.mxu0 0.0
    %62 = vmatpush1.msra.mxu0 0.0
    %63 = vmatprep.subr.mxu0 0.0
    %64 = vmatpush1.msra.mxu0 %v23
    %65 = vmatprep.subr.mxu0 0.0
    %66 = vmatpush1.msra.mxu0 %v22
    %67 = vmatprep.subr.mxu0 0.0
    %68 = vmatpush2.msra.mxu0 0.0
    %69 = vmatprep.subr.mxu0 0.0
    %70 = vmatpush2.msra.mxu0 0.0
    %71 = vmatprep.subr.mxu0 0.0
    %72 = vmatpush2.msra.mxu0 0.0
    %73 = vmatprep.subr.mxu0 0.0
    %74 = vmatpush2.msra.mxu0 0.0
    %75 = vmatprep.subr.mxu0 0.0
    %76 = vmatpush2.msra.mxu0 0.0
    %77 = vmatprep.subr.mxu0 0.0
    %78 = vmatpush2.msra.mxu0 0.0
    %79 = vmatprep.subr.mxu0 0.0
    %80 = vmatpush2.msra.mxu0 0.0
    %81 = vmatprep.subr.mxu0 0.0
    %82 = vmatpush2.msra.mxu0 0.0
    %83 = vmatprep.subr.mxu0 0.0
    %84 = vmatpush2.msra.mxu0 0.0
    %85 = vmatprep.subr.mxu0 0.0
    %86 = vmatpush2.msra.mxu0 0.0
    %87 = vmatprep.subr.mxu0 0.0
    %88 = vmatpush2.msra.mxu0 0.0
    %89 = vmatprep.subr.mxu0 0.0
    %90 = vmatpush2.msra.mxu0 0.0
    %91 = vmatprep.subr.mxu0 0.0
    %92 = vmatpush2.msra.mxu0 0.0
    %93 = vmatprep.subr.mxu0 0.0
    %94 = vmatpush2.msra.mxu0 0.0
    %95 = vmatprep.subr.mxu0 0.0
    %96 = vmatpush2.msra.mxu0 0.0
    %97 = vmatprep.subr.mxu0 0.0
    %98 = vmatpush2.msra.mxu0 0.0
    %99 = vmatprep.mubr.f32.mxu0 0.0
    %100 = vmatmul.mubr.f32.gmra.mxu0 %v33
    %v101 = vpop.f32.mrf.mxu0
    %v102 = vadd.f32 %v29, %v101
    %v103 = vpop.f32.mrf.mxu0
    %104 = vdwg.mxu0
    %v105 = vtanh.pop %v102
    %v106 = vld [vmem:[%s3] sm:$0xff]
    %v107 = vld [vmem:[%s3 + $0x8] sm:$0xff]
    %v108 = vld [vmem:[%s3 + $0x10] sm:$0xff]
    %v109 = vld [vmem:[%s3 + $0x18] sm:$0xff]
    %v110 = vld [vmem:[%s4] sm:$0x1]
    %v112 = vlaneseq
    %v113 = vshrl.u32 %v112, 7
    %v114 = vsub.s32 0, %v113
    %v115 = vrot.slane %v110, %v114
    %vm117 = vcmask 261120
    %v119 = vsel %vm117, %v105, 0
    %121 = vmatprep.subr.mxu0 0.0
    %122 = vmatpush1.msra.mxu0 0.0
    %123 = vmatprep.subr.mxu0 0.0
    %124 = vmatpush1.msra.mxu0 0.0
    %125 = vmatprep.subr.mxu0 0.0
    %126 = vmatpush1.msra.mxu0 0.0
    %127 = vmatprep.subr.mxu0 0.0
    %128 = vmatpush1.msra.mxu0 0.0
    %129 = vmatprep.subr.mxu0 0.0
    %130 = vmatpush1.msra.mxu0 0.0
    %131 = vmatprep.subr.mxu0 0.0
    %132 = vmatpush1.msra.mxu0 0.0
    %133 = vmatprep.subr.mxu0 0.0
    %134 = vmatpush1.msra.mxu0 0.0
    %135 = vmatprep.subr.mxu0 0.0
    %136 = vmatpush1.msra.mxu0 0.0
    %137 = vmatprep.subr.mxu0 0.0
    %138 = vmatpush1.msra.mxu0 0.0
    %139 = vmatprep.subr.mxu0 0.0
    %140 = vmatpush1.msra.mxu0 0.0
    %141 = vmatprep.subr.mxu0 0.0
    %142 = vmatpush1.msra.mxu0 0.0
    %143 = vmatprep.subr.mxu0 0.0
    %144 = vmatpush1.msra.mxu0 0.0
    %145 = vmatprep.subr.mxu0 0.0
    %146 = vmatpush1.msra.mxu0 %v109
    %147 = vmatprep.subr.mxu0 0.0
    %148 = vmatpush1.msra.mxu0 %v108
    %149 = vmatprep.subr.mxu0 0.0
    %150 = vmatpush1.msra.mxu0 %v107
    %151 = vmatprep.subr.mxu0 0.0
    %152 = vmatpush1.msra.mxu0 %v106
    %153 = vmatprep.subr.mxu0 0.0
    %154 = vmatpush2.msra.mxu0 0.0
    %155 = vmatprep.subr.mxu0 0.0
    %156 = vmatpush2.msra.mxu0 0.0
    %157 = vmatprep.subr.mxu0 0.0
    %158 = vmatpush2.msra.mxu0 0.0
    %159 = vmatprep.subr.mxu0 0.0
    %160 = vmatpush2.msra.mxu0 0.0
    %161 = vmatprep.subr.mxu0 0.0
    %162 = vmatpush2.msra.mxu0 0.0
    %163 = vmatprep.subr.mxu0 0.0
    %164 = vmatpush2.msra.mxu0 0.0
    %165 = vmatprep.subr.mxu0 0.0
    %166 = vmatpush2.msra.mxu0 0.0
    %167 = vmatprep.subr.mxu0 0.0
    %168 = vmatpush2.msra.mxu0 0.0
    %169 = vmatprep.subr.mxu0 0.0
    %170 = vmatpush2.msra.mxu0 0.0
    %171 = vmatprep.subr.mxu0 0.0
    %172 = vmatpush2.msra.mxu0 0.0
    %173 = vmatprep.subr.mxu0 0.0
    %174 = vmatpush2.msra.mxu0 0.0
    %175 = vmatprep.subr.mxu0 0.0
    %176 = vmatpush2.msra.mxu0 0.0
    %177 = vmatprep.subr.mxu0 0.0
    %178 = vmatpush2.msra.mxu0 0.0
    %179 = vmatprep.subr.mxu0 0.0
    %180 = vmatpush2.msra.mxu0 0.0
    %181 = vmatprep.subr.mxu0 0.0
    %182 = vmatpush2.msra.mxu0 0.0
    %183 = vmatprep.subr.mxu0 0.0
    %184 = vmatpush2.msra.mxu0 0.0
    %185 = vmatprep.mubr.f32.mxu0 0.0
    %186 = vmatmul.mubr.f32.gmra.mxu0 %v119
    %v187 = vpop.f32.mrf.mxu0
    %v188 = vadd.f32 %v115, %v187
    %v189 = vpop.f32.mrf.mxu0
    %190 = vdwg.mxu0
    %v191 = vtanh.pop %v188
    %vm192 = vcmask 64512
    %193 = vst.msk [vmem:[#allocation2] sm:$0xff] %vm192, %v191
    // Predicated region
    $region22: #{nn_mlp_custom_act_forward.1} parent=1 // pred_check
      _
    $region23: #{nn_mlp_custom_act_forward.1} parent=1 // pred_check_branch
      %195 = sbr.rel (0) target = $region25
    $region24: #{nn_mlp_custom_act_forward.1} parent=1 // pred_region
      %s197 = ssub.s32 128, 128
      %198 = vsyncadd [#allocation3], %s197
      %s200 = sshll.u32 [#allocation2], 4
      %s201 = int_to_ptr.vmem [resolvable:$true] %s200
      %203 = dma.vmem_to_hbm [thread:$0]  %s201, 128, %s5, [#allocation3]
    $region25: #{nn_mlp_custom_act_forward.1} parent=1 // pred_fallthru
      _
    // Predicated region
    $region26: #{nn_mlp_custom_act_forward.1} parent=1 // pred_check
      _
    $region27: #{nn_mlp_custom_act_forward.1} parent=1 // pred_check_branch
      %205 = sbr.rel (0) target = $region29
    $region28: #{nn_mlp_custom_act_forward.1} parent=1 // pred_region
      %206 = dma.done [#allocation3], 128
    $region29: #{nn_mlp_custom_act_forward.1} parent=1 // pred_fallthru
      _
    %207 = vsyncpa [#allocation3], 1

</llo_original>
